<compile_context>
chip_gen: v7x
topology: tpu7x:2x2x1
jax: 0.10.0
libtpu: 0.0.40
codegen_flags: <defaults>
</compile_context>

<pallas_src>
import functools

import jax
import jax.numpy as jnp
import numpy as np
from jax import lax
from jax.experimental import pallas as pl
from jax.experimental.pallas import tpu as pltpu


def _round_up(x, m):
    return ((x + m - 1) // m) * m


def _vae_loss_kernel(out_set_ref, real_set_ref, mu_ref, logvar_ref,
                     atom_logits_ref, atom_tgt_ref,
                     bond_logits_ref, bond_tgt_ref,
                     n_pred_ref, out_ref, bond_acc_ref,
                     *, lmbdas, real_n_value, n_bond_rows, n_atom_rows,
                     sub_tile):
    f32 = jnp.float32
    i = pl.program_id(0)
    n_tiles = pl.num_programs(0)

    @pl.when(i == 0)
    def _init():
        bond_acc_ref[...] = jnp.zeros_like(bond_acc_ref)

    # ---- bond CrossEntropy(reduction='sum'), this row tile --------------------
    # classes on the leading (non-vreg) axis; rows dense in (sublane, lane) so
    # every vreg pushed through the EUP/VPU is fully occupied.
    bl = bond_logits_ref[...].astype(f32)                    # [Cb, sub, 128]
    bt = bond_tgt_ref[...]                                   # [sub, 128] int32
    cls = lax.broadcasted_iota(jnp.int32, bl.shape, 0)
    onehot = (cls == bt[None, :, :]).astype(f32)
    bmax = jnp.max(bl, axis=0)                               # cross-vreg VPU max
    blse = jnp.log(jnp.sum(jnp.exp(bl - bmax[None]), axis=0)) + bmax
    picked = jnp.sum(bl * onehot, axis=0)
    resid = blse - picked                                    # [sub, 128]

    def _fold(x):
        # [sub, 128] -> dense [8, 128] via cross-vreg adds (tile-aligned reshape)
        return jnp.sum(x.reshape(sub_tile // 8, 8, 128), axis=0)

    @pl.when(i < n_tiles - 1)
    def _acc_interior():
        # interior tiles are always fully valid (rb_pad is a multiple of tile)
        bond_acc_ref[...] += _fold(resid)

    # ---- last tile: masked accumulate + finalize small terms ------------------
    @pl.when(i == n_tiles - 1)
    def _finalize():
        s_idx = lax.broadcasted_iota(jnp.int32, (sub_tile, 128), 0)
        l_idx = lax.broadcasted_iota(jnp.int32, (sub_tile, 128), 1)
        row = (i * sub_tile + s_idx) * 128 + l_idx
        valid = (row < n_bond_rows).astype(f32)
        bond_acc_ref[...] += _fold(resid * valid)

        # reconstruction loss: sum of squared error between the sets
        diff = out_set_ref[...].astype(f32) - real_set_ref[...].astype(f32)
        recon = jnp.sum(diff * diff)

        # KL divergence: -0.5 * sum(1 + log_var - mu^2 - exp(log_var))
        mu = mu_ref[...].astype(f32)
        lv = logvar_ref[...].astype(f32)
        dkl = -0.5 * jnp.sum(1.0 + lv - mu * mu - jnp.exp(lv))

        # atom-type CrossEntropy(reduction='sum'), single tiny block
        al = atom_logits_ref[...].astype(f32)                # [Ca, Ra_pad]
        at = atom_tgt_ref[...]                               # [1, Ra_pad]
        acls = lax.broadcasted_iota(jnp.int32, al.shape, 0)
        aoh = (acls == at).astype(f32)
        amax = jnp.max(al, axis=0, keepdims=True)
        alse = jnp.log(jnp.sum(jnp.exp(al - amax), axis=0, keepdims=True)) + amax
        apicked = jnp.sum(al * aoh, axis=0, keepdims=True)
        acol = lax.broadcasted_iota(jnp.int32, (1, al.shape[1]), 1)
        avalid = (acol < n_atom_rows).astype(f32)
        atom_ce = jnp.sum((alse - apicked) * avalid)

        # n MSELoss(reduction='sum') vs real_n = float(n_atoms)
        nd = n_pred_ref[...].astype(f32) - jnp.float32(real_n_value)
        n_mse = jnp.sum(nd * nd)

        # total bond CE: single (8,128)-vreg reduction
        bond_ce = jnp.sum(bond_acc_ref[...])

        l0, l1, l2, l3 = (jnp.float32(x) for x in lmbdas)
        t_dkl = l0 * dkl
        t_atom = l1 * atom_ce
        t_bond = l2 * bond_ce
        t_n = l3 * n_mse

        out_ref[0] = recon + t_dkl + t_atom + t_bond + t_n
        out_ref[1] = recon
        out_ref[2] = t_dkl
        out_ref[3] = t_atom
        out_ref[4] = t_bond
        out_ref[5] = t_n


def vae_loss(output_set, atom_types, bond_types, mu, log_var, n_pred,
             real_set, real_atom_types, real_bond_types,
             lmbdas=(1.0, 0.5, 0.5, 0.1)):
    """Returns [total, recon, l0*dkl, l1*atom, l2*bond, l3*n] as a (6,) f32 array."""
    bs, n_atoms, _ = output_set.shape
    ca = atom_types.shape[-1]
    cb = bond_types.shape[-1]
    latent = mu.shape[-1]

    # recon operands as lane-dense 2-D slabs (native dtype, cast in-kernel)
    out_set2 = output_set.reshape(bs, -1)
    real_set2 = real_set.reshape(bs, -1)
    set_w = out_set2.shape[-1]

    # atom CE: torch's atom_types.transpose(0,2).reshape(C,-1) => [Ca, R] with
    # classes on sublanes, rows (atom-major) on lanes; targets are bs-major
    # argmax, reproducing the original torch pairing exactly.
    atom_logits_t = jnp.transpose(atom_types, (2, 1, 0)).reshape(ca, -1)    # [Ca, R]
    atom_tgt = jnp.argmax(real_atom_types, axis=-1).reshape(1, -1).astype(jnp.int32)
    ra = atom_logits_t.shape[1]
    ra_pad = _round_up(max(ra, 1), 128)
    atom_logits_t = jnp.pad(atom_logits_t, ((0, 0), (0, ra_pad - ra)))
    atom_tgt = jnp.pad(atom_tgt, ((0, 0), (0, ra_pad - ra)))

    # bond CE: class-major [Cb, NB, 128] layout, rows packed densely into
    # (block, lane); tiled over the NB axis with large row tiles.
    rb = bond_types.shape[0]
    nb = max(-(-rb // 128), 1)                      # ceil(rb / 128)
    sub_tile = min(512, _round_up(nb, 8))           # rows-per-tile = sub_tile*128
    nb_pad = _round_up(nb, sub_tile)
    rb_pad = nb_pad * 128
    n_tiles = nb_pad // sub_tile
    # single pad+transpose pass of the dominant tensor, then a free reshape
    bond_logits_cm = jnp.pad(bond_types, ((0, rb_pad - rb), (0, 0))).T \
                        .reshape(cb, nb_pad, 128)
    bond_tgt_2d = jnp.pad(real_bond_types.astype(jnp.int32),
                          (0, rb_pad - rb)).reshape(nb_pad, 128)

    n_pred2 = n_pred.reshape(1, bs)

    kernel = functools.partial(
        _vae_loss_kernel,
        lmbdas=tuple(float(x) for x in lmbdas),
        real_n_value=float(n_atoms),
        n_bond_rows=rb,
        n_atom_rows=ra,
        sub_tile=sub_tile)

    def const_spec(shape):
        return pl.BlockSpec(shape, lambda i, _s=shape: (0,) * len(_s))

    in_specs = [
        const_spec((bs, set_w)),                              # output_set (2-D)
        const_spec((bs, set_w)),                              # real_set   (2-D)
        const_spec((bs, latent)),                             # mu
        const_spec((bs, latent)),                             # log_var
        const_spec((ca, ra_pad)),                             # atom logits
        const_spec((1, ra_pad)),                              # atom targets
        pl.BlockSpec((cb, sub_tile, 128), lambda i: (0, i, 0)),  # bond logits tile
        pl.BlockSpec((sub_tile, 128), lambda i: (i, 0)),         # bond target tile
        const_spec((1, bs)),                                  # n_pred
    ]

    # advisory cost hint for the XLA scheduler
    flops = 12 * cb * rb_pad + 12 * ca * ra_pad + 8 * bs * (latent + set_w)
    transcendentals = (cb + 1) * rb_pad + (ca + 1) * ra_pad + bs * latent
    bytes_accessed = sum(int(a.size) * a.dtype.itemsize for a in
                         (out_set2, real_set2, mu, log_var, atom_logits_t,
                          atom_tgt, bond_logits_cm, bond_tgt_2d, n_pred2)) + 6 * 4

    out = pl.pallas_call(
        kernel,
        out_shape=jax.ShapeDtypeStruct((6,), jnp.float32),
        grid_spec=pltpu.PrefetchScalarGridSpec(
            num_scalar_prefetch=0,
            grid=(n_tiles,),
            in_specs=in_specs,
            out_specs=pl.BlockSpec(memory_space=pltpu.MemorySpace.SMEM),
            scratch_shapes=[pltpu.VMEM((8, 128), jnp.float32)],
        ),
        compiler_params=pltpu.CompilerParams(
            dimension_semantics=("arbitrary",),
            vmem_limit_bytes=32 * 1024 * 1024,
        ),
        cost_estimate=pl.CostEstimate(
            flops=int(flops),
            transcendentals=int(transcendentals),
            bytes_accessed=int(bytes_accessed),
        ),
    )(out_set2, real_set2, mu, log_var, atom_logits_t, atom_tgt,
      bond_logits_cm, bond_tgt_2d, n_pred2)
    return out


def _reference(output_set, atom_types, bond_types, mu, log_var, n_pred,
               real_set, real_atom_types, real_bond_types, lmbdas):
    bs, n_atoms, _ = output_set.shape
    ca = atom_types.shape[-1]
    recon = jnp.sum((output_set - real_set) ** 2)
    dkl = -0.5 * jnp.sum(1 + log_var - mu ** 2 - jnp.exp(log_var))
    logits = jnp.transpose(atom_types, (2, 1, 0)).reshape(ca, -1).T
    tgt = jnp.argmax(real_atom_types, axis=-1).reshape(-1)
    logp = jax.nn.log_softmax(logits, axis=-1)
    atom_ce = -jnp.sum(jnp.take_along_axis(logp, tgt[:, None], axis=-1))
    blogp = jax.nn.log_softmax(bond_types, axis=-1)
    bond_ce = -jnp.sum(jnp.take_along_axis(blogp, real_bond_types[:, None], axis=-1))
    n_mse = jnp.sum((n_pred - float(n_atoms)) ** 2)
    l0, l1, l2, l3 = lmbdas
    total = recon + l0 * dkl + l1 * atom_ce + l2 * bond_ce + l3 * n_mse
    return jnp.stack([total, recon, l0 * dkl, l1 * atom_ce, l2 * bond_ce, l3 * n_mse])


if __name__ == "__main__":
    key = jax.random.PRNGKey(0)
    bs, n_atoms, latent = 2, 8, 32
    n_atom_types, n_bond_types = 5, 4
    n_bond_rows = bs * n_atoms * n_atoms
    lmbdas = (1.0, 0.5, 0.5, 0.1)

    ks = jax.random.split(key, 9)
    output_set = jax.random.normal(ks[0], (bs, n_atoms, 3), jnp.float32)
    real_set = jax.random.normal(ks[1], (bs, n_atoms, 3), jnp.float32)
    mu = jax.random.normal(ks[2], (bs, latent), jnp.float32)
    log_var = 0.1 * jax.random.normal(ks[3], (bs, latent), jnp.float32)
    atom_types = jax.random.normal(ks[4], (bs, n_atoms, n_atom_types), jnp.float32)
    real_atom_types = jax.nn.one_hot(
        jax.random.randint(ks[5], (bs, n_atoms), 0, n_atom_types), n_atom_types,
        dtype=jnp.float32)
    bond_types = jax.random.normal(ks[6], (n_bond_rows, n_bond_types), jnp.float32)
    real_bond_types = jax.random.randint(ks[7], (n_bond_rows,), 0, n_bond_types)
    n_pred = float(n_atoms) + 0.5 * jax.random.normal(ks[8], (bs,), jnp.float32)

    losses = vae_loss(output_set, atom_types, bond_types, mu, log_var, n_pred,
                      real_set, real_atom_types, real_bond_types, lmbdas)
    losses = jax.block_until_ready(losses)

    ref = _reference(output_set, atom_types, bond_types, mu, log_var, n_pred,
                     real_set, real_atom_types, real_bond_types, lmbdas)
    np.testing.assert_allclose(np.asarray(losses), np.asarray(ref),
                               rtol=1e-4, atol=1e-3)
    print("KERNEL_OK")
</pallas_src>

<mosaic_0001>
module attributes {stable_mosaic.version = 11 : i64} {
  func.func @_vae_loss_kernel(%arg0: i32, %arg1: memref<2x24xf32, #tpu.memory_space<vmem>>, %arg2: memref<2x24xf32, #tpu.memory_space<vmem>>, %arg3: memref<2x32xf32, #tpu.memory_space<vmem>>, %arg4: memref<2x32xf32, #tpu.memory_space<vmem>>, %arg5: memref<5x128xf32, #tpu.memory_space<vmem>>, %arg6: memref<1x128xi32, #tpu.memory_space<vmem>>, %arg7: memref<4x8x128xf32, #tpu.memory_space<vmem>>, %arg8: memref<8x128xi32, #tpu.memory_space<vmem>>, %arg9: memref<1x2xf32, #tpu.memory_space<vmem>>, %arg10: memref<6xf32, #tpu.memory_space<smem>>, %arg11: memref<8x128xf32, #tpu.memory_space<vmem>>) attributes {dimension_semantics = [#tpu.dimension_semantics<arbitrary>], iteration_bounds = array<i64: 1>, scalar_prefetch = 0 : i64, scratch_operands = 1 : i64, tpu.core_type = #tpu.core_type<tc>, window_params = [{pipeline_mode = #tpu.pipeline_mode<synchronous>, transform_indices = @transform_0, window_bounds = array<i64: 2, 24>}, {pipeline_mode = #tpu.pipeline_mode<synchronous>, transform_indices = @transform_1, window_bounds = array<i64: 2, 24>}, {pipeline_mode = #tpu.pipeline_mode<synchronous>, transform_indices = @transform_2, window_bounds = array<i64: 2, 32>}, {pipeline_mode = #tpu.pipeline_mode<synchronous>, transform_indices = @transform_3, window_bounds = array<i64: 2, 32>}, {pipeline_mode = #tpu.pipeline_mode<synchronous>, transform_indices = @transform_4, window_bounds = array<i64: 5, 128>}, {pipeline_mode = #tpu.pipeline_mode<synchronous>, transform_indices = @transform_5, window_bounds = array<i64: 1, 128>}, {transform_indices = @transform_6, window_bounds = array<i64: 4, 8, 128>}, {transform_indices = @transform_7, window_bounds = array<i64: 8, 128>}, {pipeline_mode = #tpu.pipeline_mode<synchronous>, transform_indices = @transform_8, window_bounds = array<i64: 1, 2>}, {transform_indices = @transform_9, window_bounds = array<i64: 6>}]} {
    %c0_i32 = arith.constant 0 : i32
    %0 = arith.cmpi eq, %arg0, %c0_i32 : i32
    %1 = arith.extui %0 : i1 to i32
    %c0_i32_0 = arith.constant 0 : i32
    %2 = arith.cmpi ne, %1, %c0_i32_0 : i32
    scf.if %2 {
      %cst_11 = arith.constant 0.000000e+00 : f32
      %28 = vector.broadcast %cst_11 : f32 to vector<8x128xf32>
      %c0_12 = arith.constant 0 : index
      %c0_13 = arith.constant 0 : index
      %29 = vector.load %arg11[%c0_12, %c0_13] : memref<8x128xf32, #tpu.memory_space<vmem>>, vector<8x128xf32>
      tpu.vector_store %arg11[%c0_12, %c0_13], %28 {strides = array<i32>} : memref<8x128xf32, #tpu.memory_space<vmem>>, vector<8x128xf32>,
    } else {
    }
    %c0 = arith.constant 0 : index
    %c0_1 = arith.constant 0 : index
    %c0_2 = arith.constant 0 : index
    %3 = vector.load %arg7[%c0, %c0_1, %c0_2] : memref<4x8x128xf32, #tpu.memory_space<vmem>>, vector<4x8x128xf32>
    %c0_3 = arith.constant 0 : index
    %c0_4 = arith.constant 0 : index
    %4 = vector.load %arg8[%c0_3, %c0_4] : memref<8x128xi32, #tpu.memory_space<vmem>>, vector<8x128xi32>
    %5 = tpu.iota {dimensions = array<i32: 0>} : vector<4x8x128xi32>
    %6 = vector.shape_cast %4 : vector<8x128xi32> to vector<1x8x128xi32>
    %7 = vector.broadcast %6 : vector<1x8x128xi32> to vector<4x8x128xi32>
    %8 = arith.cmpi eq, %5, %7 : vector<4x8x128xi32>
    %9 = arith.extui %8 : vector<4x8x128xi1> to vector<4x8x128xi32>
    %10 = arith.sitofp %9 : vector<4x8x128xi32> to vector<4x8x128xf32>
    %cst = arith.constant dense<0xFF800000> : vector<8x128xf32>
    %11 = vector.multi_reduction <maximumf>, %3, %cst [0] : vector<4x8x128xf32> to vector<8x128xf32>
    %12 = vector.shape_cast %11 : vector<8x128xf32> to vector<1x8x128xf32>
    %13 = vector.broadcast %12 : vector<1x8x128xf32> to vector<4x8x128xf32>
    %14 = arith.subf %3, %13 : vector<4x8x128xf32>
    %15 = math.exp %14 : vector<4x8x128xf32>
    %cst_5 = arith.constant dense<0.000000e+00> : vector<8x128xf32>
    %16 = vector.multi_reduction <add>, %15, %cst_5 [0] : vector<4x8x128xf32> to vector<8x128xf32>
    %17 = math.log %16 : vector<8x128xf32>
    %18 = arith.addf %17, %11 : vector<8x128xf32>
    %19 = arith.mulf %3, %10 : vector<4x8x128xf32>
    %cst_6 = arith.constant dense<0.000000e+00> : vector<8x128xf32>
    %20 = vector.multi_reduction <add>, %19, %cst_6 [0] : vector<4x8x128xf32> to vector<8x128xf32>
    %21 = arith.subf %18, %20 : vector<8x128xf32>
    %c0_i32_7 = arith.constant 0 : i32
    %22 = arith.cmpi slt, %arg0, %c0_i32_7 : i32
    %23 = arith.extui %22 : i1 to i32
    %c0_i32_8 = arith.constant 0 : i32
    %24 = arith.cmpi ne, %23, %c0_i32_8 : i32
    scf.if %24 {
      %c0_11 = arith.constant 0 : index
      %c0_12 = arith.constant 0 : index
      %28 = vector.load %arg11[%c0_11, %c0_12] : memref<8x128xf32, #tpu.memory_space<vmem>>, vector<8x128xf32>
      %29 = vector.shape_cast %21 : vector<8x128xf32> to vector<1x8x128xf32>
      %cst_13 = arith.constant dense<0.000000e+00> : vector<8x128xf32>
      %30 = vector.multi_reduction <add>, %29, %cst_13 [0] : vector<1x8x128xf32> to vector<8x128xf32>
      %31 = arith.addf %28, %30 : vector<8x128xf32>
      %c0_14 = arith.constant 0 : index
      %c0_15 = arith.constant 0 : index
      %32 = vector.load %arg11[%c0_14, %c0_15] : memref<8x128xf32, #tpu.memory_space<vmem>>, vector<8x128xf32>
      tpu.vector_store %arg11[%c0_14, %c0_15], %31 {strides = array<i32>} : memref<8x128xf32, #tpu.memory_space<vmem>>, vector<8x128xf32>,
    } else {
    }
    %c0_i32_9 = arith.constant 0 : i32
    %25 = arith.cmpi eq, %arg0, %c0_i32_9 : i32
    %26 = arith.extui %25 : i1 to i32
    %c0_i32_10 = arith.constant 0 : i32
    %27 = arith.cmpi ne, %26, %c0_i32_10 : i32
    scf.if %27 {
      %28 = tpu.iota {dimensions = array<i32: 0>} : vector<8x128xi32>
      %29 = tpu.iota {dimensions = array<i32: 1>} : vector<8x128xi32>
      %c8_i32 = arith.constant 8 : i32
      %30 = arith.muli %arg0, %c8_i32 : i32
      %31 = vector.broadcast %30 : i32 to vector<8x128xi32>
      %32 = arith.addi %31, %28 : vector<8x128xi32>
      %c128_i32 = arith.constant 128 : i32
      %33 = vector.broadcast %c128_i32 : i32 to vector<8x128xi32>
      %34 = arith.muli %32, %33 : vector<8x128xi32>
      %35 = arith.addi %34, %29 : vector<8x128xi32>
      %c128_i32_11 = arith.constant 128 : i32
      %36 = vector.broadcast %c128_i32_11 : i32 to vector<8x128xi32>
      %37 = arith.cmpi slt, %35, %36 : vector<8x128xi32>
      %38 = arith.extui %37 : vector<8x128xi1> to vector<8x128xi32>
      %39 = arith.sitofp %38 : vector<8x128xi32> to vector<8x128xf32>
      %c0_12 = arith.constant 0 : index
      %c0_13 = arith.constant 0 : index
      %40 = vector.load %arg11[%c0_12, %c0_13] : memref<8x128xf32, #tpu.memory_space<vmem>>, vector<8x128xf32>
      %41 = arith.mulf %21, %39 : vector<8x128xf32>
      %42 = vector.shape_cast %41 : vector<8x128xf32> to vector<1x8x128xf32>
      %cst_14 = arith.constant dense<0.000000e+00> : vector<8x128xf32>
      %43 = vector.multi_reduction <add>, %42, %cst_14 [0] : vector<1x8x128xf32> to vector<8x128xf32>
      %44 = arith.addf %40, %43 : vector<8x128xf32>
      %c0_15 = arith.constant 0 : index
      %c0_16 = arith.constant 0 : index
      %45 = vector.load %arg11[%c0_15, %c0_16] : memref<8x128xf32, #tpu.memory_space<vmem>>, vector<8x128xf32>
      tpu.vector_store %arg11[%c0_15, %c0_16], %44 {strides = array<i32>} : memref<8x128xf32, #tpu.memory_space<vmem>>, vector<8x128xf32>,
      %c0_17 = arith.constant 0 : index
      %c0_18 = arith.constant 0 : index
      %46 = vector.load %arg1[%c0_17, %c0_18] : memref<2x24xf32, #tpu.memory_space<vmem>>, vector<2x24xf32>
      %c0_19 = arith.constant 0 : index
      %c0_20 = arith.constant 0 : index
      %47 = vector.load %arg2[%c0_19, %c0_20] : memref<2x24xf32, #tpu.memory_space<vmem>>, vector<2x24xf32>
      %48 = arith.subf %46, %47 : vector<2x24xf32>
      %49 = arith.mulf %48, %48 : vector<2x24xf32>
      %50 = vector.shape_cast %49 : vector<2x24xf32> to vector<1x2x24xf32>
      %cst_21 = arith.constant dense<0.000000e+00> : vector<1xf32>
      %51 = vector.multi_reduction <add>, %50, %cst_21 [1, 2] : vector<1x2x24xf32> to vector<1xf32>
      %52 = vector.shape_cast %51 : vector<1xf32> to vector<1x1x1xf32>
      %53 = vector.extract %52[0, 0, 0] : f32 from vector<1x1x1xf32>
      %c0_22 = arith.constant 0 : index
      %c0_23 = arith.constant 0 : index
      %54 = vector.load %arg3[%c0_22, %c0_23] : memref<2x32xf32, #tpu.memory_space<vmem>>, vector<2x32xf32>
      %c0_24 = arith.constant 0 : index
      %c0_25 = arith.constant 0 : index
      %55 = vector.load %arg4[%c0_24, %c0_25] : memref<2x32xf32, #tpu.memory_space<vmem>>, vector<2x32xf32>
      %cst_26 = arith.constant 1.000000e+00 : f32
      %56 = vector.broadcast %cst_26 : f32 to vector<2x32xf32>
      %57 = arith.addf %56, %55 : vector<2x32xf32>
      %58 = arith.mulf %54, %54 : vector<2x32xf32>
      %59 = arith.subf %57, %58 : vector<2x32xf32>
      %60 = math.exp %55 : vector<2x32xf32>
      %61 = arith.subf %59, %60 : vector<2x32xf32>
      %62 = vector.shape_cast %61 : vector<2x32xf32> to vector<1x2x32xf32>
      %cst_27 = arith.constant dense<0.000000e+00> : vector<1xf32>
      %63 = vector.multi_reduction <add>, %62, %cst_27 [1, 2] : vector<1x2x32xf32> to vector<1xf32>
      %64 = vector.shape_cast %63 : vector<1xf32> to vector<1x1x1xf32>
      %65 = vector.extract %64[0, 0, 0] : f32 from vector<1x1x1xf32>
      %cst_28 = arith.constant -5.000000e-01 : f32
      %66 = arith.mulf %cst_28, %65 : f32
      %c0_29 = arith.constant 0 : index
      %c0_30 = arith.constant 0 : index
      %67 = vector.load %arg5[%c0_29, %c0_30] : memref<5x128xf32, #tpu.memory_space<vmem>>, vector<5x128xf32>
      %c0_31 = arith.constant 0 : index
      %c0_32 = arith.constant 0 : index
      %68 = vector.load %arg6[%c0_31, %c0_32] : memref<1x128xi32, #tpu.memory_space<vmem>>, vector<1x128xi32>
      %69 = tpu.iota {dimensions = array<i32: 0>} : vector<5x128xi32>
      %70 = vector.broadcast %68 : vector<1x128xi32> to vector<5x128xi32>
      %71 = arith.cmpi eq, %69, %70 : vector<5x128xi32>
      %72 = arith.extui %71 : vector<5x128xi1> to vector<5x128xi32>
      %73 = arith.sitofp %72 : vector<5x128xi32> to vector<5x128xf32>
      %cst_33 = arith.constant dense<0xFF800000> : vector<128xf32>
      %74 = vector.multi_reduction <maximumf>, %67, %cst_33 [0] : vector<5x128xf32> to vector<128xf32>
      %75 = vector.shape_cast %74 : vector<128xf32> to vector<1x128xf32>
      %76 = vector.broadcast %75 : vector<1x128xf32> to vector<5x128xf32>
      %77 = arith.subf %67, %76 : vector<5x128xf32>
      %78 = math.exp %77 : vector<5x128xf32>
      %cst_34 = arith.constant dense<0.000000e+00> : vector<128xf32>
      %79 = vector.multi_reduction <add>, %78, %cst_34 [0] : vector<5x128xf32> to vector<128xf32>
      %80 = vector.shape_cast %79 : vector<128xf32> to vector<1x128xf32>
      %81 = math.log %80 : vector<1x128xf32>
      %82 = arith.addf %81, %75 : vector<1x128xf32>
      %83 = arith.mulf %67, %73 : vector<5x128xf32>
      %cst_35 = arith.constant dense<0.000000e+00> : vector<128xf32>
      %84 = vector.multi_reduction <add>, %83, %cst_35 [0] : vector<5x128xf32> to vector<128xf32>
      %85 = vector.shape_cast %84 : vector<128xf32> to vector<1x128xf32>
      %86 = tpu.iota {dimensions = array<i32: 1>} : vector<1x128xi32>
      %c16_i32 = arith.constant 16 : i32
      %87 = vector.broadcast %c16_i32 : i32 to vector<1x128xi32>
      %88 = arith.cmpi slt, %86, %87 : vector<1x128xi32>
      %89 = arith.extui %88 : vector<1x128xi1> to vector<1x128xi32>
      %90 = arith.sitofp %89 : vector<1x128xi32> to vector<1x128xf32>
      %91 = arith.subf %82, %85 : vector<1x128xf32>
      %92 = arith.mulf %91, %90 : vector<1x128xf32>
      %93 = vector.shape_cast %92 : vector<1x128xf32> to vector<1x1x128xf32>
      %cst_36 = arith.constant dense<0.000000e+00> : vector<1xf32>
      %94 = vector.multi_reduction <add>, %93, %cst_36 [1, 2] : vector<1x1x128xf32> to vector<1xf32>
      %95 = vector.shape_cast %94 : vector<1xf32> to vector<1x1x1xf32>
      %96 = vector.extract %95[0, 0, 0] : f32 from vector<1x1x1xf32>
      %c0_37 = arith.constant 0 : index
      %c0_38 = arith.constant 0 : index
      %97 = vector.load %arg9[%c0_37, %c0_38] : memref<1x2xf32, #tpu.memory_space<vmem>>, vector<1x2xf32>
      %cst_39 = arith.constant 8.000000e+00 : f32
      %98 = vector.broadcast %cst_39 : f32 to vector<1x2xf32>
      %99 = arith.subf %97, %98 : vector<1x2xf32>
      %100 = arith.mulf %99, %99 : vector<1x2xf32>
      %101 = vector.shape_cast %100 : vector<1x2xf32> to vector<1x1x2xf32>
      %cst_40 = arith.constant dense<0.000000e+00> : vector<1xf32>
      %102 = vector.multi_reduction <add>, %101, %cst_40 [1, 2] : vector<1x1x2xf32> to vector<1xf32>
      %103 = vector.shape_cast %102 : vector<1xf32> to vector<1x1x1xf32>
      %104 = vector.extract %103[0, 0, 0] : f32 from vector<1x1x1xf32>
      %c0_41 = arith.constant 0 : index
      %c0_42 = arith.constant 0 : index
      %105 = vector.load %arg11[%c0_41, %c0_42] : memref<8x128xf32, #tpu.memory_space<vmem>>, vector<8x128xf32>
      %106 = vector.shape_cast %105 : vector<8x128xf32> to vector<1x8x128xf32>
      %cst_43 = arith.constant dense<0.000000e+00> : vector<1xf32>
      %107 = vector.multi_reduction <add>, %106, %cst_43 [1, 2] : vector<1x8x128xf32> to vector<1xf32>
      %108 = vector.shape_cast %107 : vector<1xf32> to vector<1x1x1xf32>
      %109 = vector.extract %108[0, 0, 0] : f32 from vector<1x1x1xf32>
      %cst_44 = arith.constant 1.000000e+00 : f32
      %110 = arith.mulf %cst_44, %66 : f32
      %cst_45 = arith.constant 5.000000e-01 : f32
      %111 = arith.mulf %cst_45, %96 : f32
      %cst_46 = arith.constant 5.000000e-01 : f32
      %112 = arith.mulf %cst_46, %109 : f32
      %cst_47 = arith.constant 1.000000e-01 : f32
      %113 = arith.mulf %cst_47, %104 : f32
      %114 = arith.addf %53, %110 : f32
      %115 = arith.addf %114, %111 : f32
      %116 = arith.addf %115, %112 : f32
      %117 = arith.addf %116, %113 : f32
      %c0_48 = arith.constant 0 : index
      %118 = memref.load %arg10[%c0_48] : memref<6xf32, #tpu.memory_space<smem>>
      memref.store %117, %arg10[%c0_48] : memref<6xf32, #tpu.memory_space<smem>>
      %c1 = arith.constant 1 : index
      %119 = memref.load %arg10[%c1] : memref<6xf32, #tpu.memory_space<smem>>
      memref.store %53, %arg10[%c1] : memref<6xf32, #tpu.memory_space<smem>>
      %c2 = arith.constant 2 : index
      %120 = memref.load %arg10[%c2] : memref<6xf32, #tpu.memory_space<smem>>
      memref.store %110, %arg10[%c2] : memref<6xf32, #tpu.memory_space<smem>>
      %c3 = arith.constant 3 : index
      %121 = memref.load %arg10[%c3] : memref<6xf32, #tpu.memory_space<smem>>
      memref.store %111, %arg10[%c3] : memref<6xf32, #tpu.memory_space<smem>>
      %c4 = arith.constant 4 : index
      %122 = memref.load %arg10[%c4] : memref<6xf32, #tpu.memory_space<smem>>
      memref.store %112, %arg10[%c4] : memref<6xf32, #tpu.memory_space<smem>>
      %c5 = arith.constant 5 : index
      %123 = memref.load %arg10[%c5] : memref<6xf32, #tpu.memory_space<smem>>
      memref.store %113, %arg10[%c5] : memref<6xf32, #tpu.memory_space<smem>>
    } else {
    }
    return
  }
  func.func @transform_0(%arg0: i32) -> (i32, i32) {
    %c0_i32 = arith.constant 0 : i32
    %c0_i32_0 = arith.constant 0 : i32
    %c0_i32_1 = arith.constant 0 : i32
    return %c0_i32, %c0_i32_0 : i32, i32
  }
  func.func @transform_1(%arg0: i32) -> (i32, i32) {
    %c0_i32 = arith.constant 0 : i32
    %c0_i32_0 = arith.constant 0 : i32
    %c0_i32_1 = arith.constant 0 : i32
    return %c0_i32, %c0_i32_0 : i32, i32
  }
  func.func @transform_2(%arg0: i32) -> (i32, i32) {
    %c0_i32 = arith.constant 0 : i32
    %c0_i32_0 = arith.constant 0 : i32
    %c0_i32_1 = arith.constant 0 : i32
    return %c0_i32, %c0_i32_0 : i32, i32
  }
  func.func @transform_3(%arg0: i32) -> (i32, i32) {
    %c0_i32 = arith.constant 0 : i32
    %c0_i32_0 = arith.constant 0 : i32
    %c0_i32_1 = arith.constant 0 : i32
    return %c0_i32, %c0_i32_0 : i32, i32
  }
  func.func @transform_4(%arg0: i32) -> (i32, i32) {
    %c0_i32 = arith.constant 0 : i32
    %c0_i32_0 = arith.constant 0 : i32
    %c0_i32_1 = arith.constant 0 : i32
    return %c0_i32, %c0_i32_0 : i32, i32
  }
  func.func @transform_5(%arg0: i32) -> (i32, i32) {
    %c0_i32 = arith.constant 0 : i32
    %c0_i32_0 = arith.constant 0 : i32
    %c0_i32_1 = arith.constant 0 : i32
    return %c0_i32, %c0_i32_0 : i32, i32
  }
  func.func @transform_6(%arg0: i32) -> (i32, i32, i32) {
    %c0_i32 = arith.constant 0 : i32
    %c0_i32_0 = arith.constant 0 : i32
    %c0_i32_1 = arith.constant 0 : i32
    return %c0_i32, %arg0, %c0_i32_0 : i32, i32, i32
  }
  func.func @transform_7(%arg0: i32) -> (i32, i32) {
    %c0_i32 = arith.constant 0 : i32
    %c0_i32_0 = arith.constant 0 : i32
    return %arg0, %c0_i32 : i32, i32
  }
  func.func @transform_8(%arg0: i32) -> (i32, i32) {
    %c0_i32 = arith.constant 0 : i32
    %c0_i32_0 = arith.constant 0 : i32
    %c0_i32_1 = arith.constant 0 : i32
    return %c0_i32, %c0_i32_0 : i32, i32
  }
  func.func @transform_9(%arg0: i32) -> i32 {
    %c0_i32 = arith.constant 0 : i32
    %c0_i32_0 = arith.constant 0 : i32
    return %c0_i32 : i32
  }
}

</mosaic_0001>

<llo_original>
// kernel: tpu_custom_call.1
$region0: #{tpu_custom_call.1}
  #allocation0 [shape = 'u32[]', space=smem, size = 0x4, offset = 0x4, fixed_abs, tag = 'smem constant byte address 0x4 - core index']
  #allocation1 [shape = 'u32[144,128]{1,0:T(1,128)}', space=vmem, size = 0x12000, scoped, tag = 'internal scratch']
  #allocation2 [shape = 'f32[8,128]{1,0:T(8,128)}', space=vmem, size = 0x1000, scoped, tag = 'scratch operand']
  %s0 = inlined_call_operand.hbm [shape: f32[2,24], index: 0, kind: input, shape index: {}]
  %s1 = inlined_call_operand.vmem [shape: f32[2,24], index: 1, kind: input, shape index: {}]
  %s2 = inlined_call_operand.hbm [shape: f32[2,32], index: 2, kind: input, shape index: {}]
  %s3 = inlined_call_operand.hbm [shape: f32[2,32], index: 3, kind: input, shape index: {}]
  %s4 = inlined_call_operand.vmem [shape: f32[5,128], index: 4, kind: input, shape index: {}]
  %s5 = inlined_call_operand.hbm [shape: s32[1,128], index: 5, kind: input, shape index: {}]
  %s6 = inlined_call_operand.hbm [shape: f32[4,8,128], index: 6, kind: input, shape index: {}]
  %s7 = inlined_call_operand.vmem [shape: s32[8,128], index: 7, kind: input, shape index: {}]
  %s8 = inlined_call_operand.vmem [shape: f32[1,2], index: 8, kind: input, shape index: {}]
  %s9 = inlined_call_operand.hbm [shape: f32[6], index: 9, kind: output, shape index: {}]
  %s10 = sld [smem:[#allocation0]]
  $region78: #{tpu_custom_call.1} parent=0
    _
  %s12 = ssub.s32 1, %s10
  %s13 = scalar_select 0, %s12, %s10
  $region1: #{tpu_custom_call.1} parent=0
    #allocation3 [shape = 'u8[1024]{0}', space=vmem, size = 0x400, scoped, tag = 'input window, operand 0, single buffered']
    #allocation4 [shape = 's32[1]{0}', space=sflag, size = 0x4, scoped, tag = 'scoped memory for tpu_custom_call.1']
    #allocation5 [shape = 's32[1]{0}', space=sflag, size = 0x4, scoped, tag = 'scoped memory for tpu_custom_call.1']
    #allocation6 [shape = 'u8[1024]{0}', space=vmem, size = 0x400, scoped, tag = 'input window, operand 2, single buffered']
    #allocation7 [shape = 's32[1]{0}', space=sflag, size = 0x4, scoped, tag = 'scoped memory for tpu_custom_call.1']
    #allocation8 [shape = 'u8[1024]{0}', space=vmem, size = 0x400, scoped, tag = 'input window, operand 3, single buffered']
    #allocation9 [shape = 'u8[512]{0}', space=vmem, size = 0x400, scoped, tag = 'input window, operand 5, single buffered']
    #allocation10 [shape = 's32[1]{0}', space=sflag, size = 0x4, scoped, tag = 'scoped memory for tpu_custom_call.1']
    #allocation11 [shape = 'u8[16384]{0}', space=vmem, size = 0x4000, scoped, tag = 'input window, operand 6, single buffered']
    #allocation12 [shape = 'u8[512]{0}', space=smem, size = 0x200, scoped, tag = 'output window, operand 0, single buffered']
    %14 = vsyncpa [#allocation4], 0
    %15 = vsyncpa [#allocation7], 0
    %16 = vsyncpa [#allocation10], 0
    %17 = vsyncpa [#allocation5], 0
    // Predicated region
    $region2: #{tpu_custom_call.1} parent=1 // pred_check
      _
    $region3: #{tpu_custom_call.1} parent=1 // pred_check_branch
      %19 = sbr.rel (0) target = $region5
    $region4: #{tpu_custom_call.1} parent=1 // pred_region
      %s21 = ssub.s32 32, 32
      %22 = vsyncadd [#allocation4], %s21
      %s24 = sshll.u32 [#allocation3], 4
      %s25 = int_to_ptr.vmem [resolvable:$true] %s24
      %27 = dma.hbm_to_vmem [thread:$0]  %s0, 32, %s25, [#allocation4]
    $region5: #{tpu_custom_call.1} parent=1 // pred_fallthru
      _
    // Predicated region
    $region6: #{tpu_custom_call.1} parent=1 // pred_check
      _
    $region7: #{tpu_custom_call.1} parent=1 // pred_check_branch
      %29 = sbr.rel (0) target = $region9
    $region8: #{tpu_custom_call.1} parent=1 // pred_region
      _
    $region9: #{tpu_custom_call.1} parent=1 // pred_fallthru
      _
    // Predicated region
    $region10: #{tpu_custom_call.1} parent=1 // pred_check
      _
    $region11: #{tpu_custom_call.1} parent=1 // pred_check_branch
      %31 = sbr.rel (0) target = $region13
    $region12: #{tpu_custom_call.1} parent=1 // pred_region
      %s33 = ssub.s32 32, 32
      %34 = vsyncadd [#allocation7], %s33
      %s36 = sshll.u32 [#allocation6], 4
      %s37 = int_to_ptr.vmem [resolvable:$true] %s36
      %39 = dma.hbm_to_vmem [thread:$0]  %s2, 32, %s37, [#allocation7]
    $region13: #{tpu_custom_call.1} parent=1 // pred_fallthru
      _
    // Predicated region
    $region14: #{tpu_custom_call.1} parent=1 // pred_check
      _
    $region15: #{tpu_custom_call.1} parent=1 // pred_check_branch
      %41 = sbr.rel (0) target = $region17
    $region16: #{tpu_custom_call.1} parent=1 // pred_region
      %s43 = ssub.s32 32, 32
      %44 = vsyncadd [#allocation7], %s43
      %s46 = sshll.u32 [#allocation8], 4
      %s47 = int_to_ptr.vmem [resolvable:$true] %s46
      %49 = dma.hbm_to_vmem [thread:$0]  %s3, 32, %s47, [#allocation7]
    $region17: #{tpu_custom_call.1} parent=1 // pred_fallthru
      _
    // Predicated region
    $region18: #{tpu_custom_call.1} parent=1 // pred_check
      _
    $region19: #{tpu_custom_call.1} parent=1 // pred_check_branch
      %51 = sbr.rel (0) target = $region21
    $region20: #{tpu_custom_call.1} parent=1 // pred_region
      _
    $region21: #{tpu_custom_call.1} parent=1 // pred_fallthru
      _
    // Predicated region
    $region22: #{tpu_custom_call.1} parent=1 // pred_check
      _
    $region23: #{tpu_custom_call.1} parent=1 // pred_check_branch
      %53 = sbr.rel (0) target = $region25
    $region24: #{tpu_custom_call.1} parent=1 // pred_region
      %s55 = ssub.s32 16, 16
      %56 = vsyncadd [#allocation10], %s55
      %s58 = sshll.u32 [#allocation9], 4
      %s59 = int_to_ptr.vmem [resolvable:$true] %s58
      %61 = dma.hbm_to_vmem [thread:$0]  %s5, 16, %s59, [#allocation10]
    $region25: #{tpu_custom_call.1} parent=1 // pred_fallthru
      _
    // Predicated region
    $region26: #{tpu_custom_call.1} parent=1 // pred_check
      _
    $region27: #{tpu_custom_call.1} parent=1 // pred_check_branch
      %63 = sbr.rel (0) target = $region29
    $region28: #{tpu_custom_call.1} parent=1 // pred_region
      %s65 = ssub.s32 512, 512
      %66 = vsyncadd [#allocation10], %s65
      %s67 = sshll.u32 [#allocation11], 4
      %s68 = int_to_ptr.vmem [resolvable:$true] %s67
      %73 = dma.hbm_to_vmem [thread:$0]  %s6, 512, %s68, [#allocation10], 128, 128, 8
    $region29: #{tpu_custom_call.1} parent=1 // pred_fallthru
      _
    // Predicated region
    $region30: #{tpu_custom_call.1} parent=1 // pred_check
      _
    $region31: #{tpu_custom_call.1} parent=1 // pred_check_branch
      %75 = sbr.rel (0) target = $region33
    $region32: #{tpu_custom_call.1} parent=1 // pred_region
      _
    $region33: #{tpu_custom_call.1} parent=1 // pred_fallthru
      _
    // Predicated region
    $region34: #{tpu_custom_call.1} parent=1 // pred_check
      _
    $region35: #{tpu_custom_call.1} parent=1 // pred_check_branch
      %77 = sbr.rel (0) target = $region37
    $region36: #{tpu_custom_call.1} parent=1 // pred_region
      _
    $region37: #{tpu_custom_call.1} parent=1 // pred_fallthru
      _
    // Predicated region
    $region38: #{tpu_custom_call.1} parent=1 // pred_check
      _
    $region39: #{tpu_custom_call.1} parent=1 // pred_check_branch
      %79 = sbr.rel (0) target = $region41
    $region40: #{tpu_custom_call.1} parent=1 // pred_region
      %80 = dma.done [#allocation4], 32
    $region41: #{tpu_custom_call.1} parent=1 // pred_fallthru
      _
    // Predicated region
    $region42: #{tpu_custom_call.1} parent=1 // pred_check
      _
    $region43: #{tpu_custom_call.1} parent=1 // pred_check_branch
      %82 = sbr.rel (0) target = $region45
    $region44: #{tpu_custom_call.1} parent=1 // pred_region
      %83 = dma.done [#allocation7], 32
    $region45: #{tpu_custom_call.1} parent=1 // pred_fallthru
      _
    // Predicated region
    $region46: #{tpu_custom_call.1} parent=1 // pred_check
      _
    $region47: #{tpu_custom_call.1} parent=1 // pred_check_branch
      %85 = sbr.rel (0) target = $region49
    $region48: #{tpu_custom_call.1} parent=1 // pred_region
      %86 = dma.done [#allocation7], 32
    $region49: #{tpu_custom_call.1} parent=1 // pred_fallthru
      _
    // Predicated region
    $region50: #{tpu_custom_call.1} parent=1 // pred_check
      _
    $region51: #{tpu_custom_call.1} parent=1 // pred_check_branch
      %88 = sbr.rel (0) target = $region53
    $region52: #{tpu_custom_call.1} parent=1 // pred_region
      %89 = dma.done [#allocation10], 16
    $region53: #{tpu_custom_call.1} parent=1 // pred_fallthru
      _
    // Predicated region
    $region54: #{tpu_custom_call.1} parent=1 // pred_check
      _
    $region55: #{tpu_custom_call.1} parent=1 // pred_check_branch
      %91 = sbr.rel (0) target = $region57
    $region56: #{tpu_custom_call.1} parent=1 // pred_region
      %92 = dma.done [#allocation10], 512
    $region57: #{tpu_custom_call.1} parent=1 // pred_fallthru
      _
    %p93 = scmp.eq.s32.totalorder 0, 0
    // Predicated region
    $region58: #{tpu_custom_call.1} parent=1 // pred_check
      %p94 = pneg %p93
    $region59: #{tpu_custom_call.1} parent=1 // pred_check_branch
      %96 = sbr.rel (%p94) target = $region61
    $region60: #{tpu_custom_call.1} parent=1 // pred_region
      %97 = vst [vmem:[#allocation2] sm:$0xff] 0.0
    $region61: #{tpu_custom_call.1} parent=1 // pred_fallthru
      _
    %v98 = vld [vmem:[#allocation11] sm:$0xff]
    %v99 = vld [vmem:[#allocation11 + $0x8] sm:$0xff]
    %v100 = vld [vmem:[#allocation11 + $0x10] sm:$0xff]
    %v101 = vld [vmem:[#allocation11 + $0x18] sm:$0xff]
    %v102 = vld [vmem:[%s7] sm:$0xff]
    %vm103 = vcmp.eq.s32.totalorder %v102, 0
    %vm104 = vcmp.eq.s32.totalorder %v102, 1
    %vm105 = vcmp.eq.s32.totalorder %v102, 2
    %vm106 = vcmp.eq.s32.totalorder %v102, 3
    %v107 = vsel %vm103, 1, 0
    %v108 = vsel %vm104, 1, 0
    %v109 = vsel %vm105, 1, 0
    %v110 = vsel %vm106, 1, 0
    %v111 = vcvt.s32.f32 %v107
    %v112 = vcvt.s32.f32 %v108
    %v113 = vcvt.s32.f32 %v109
    %v114 = vcvt.s32.f32 %v110
    %v115 = vmax.f32 %v98, %v99
    %v116 = vmax.f32 %v100, %v101
    %v117 = vmax.f32 %v115, %v116
    %v118 = vsub.f32 %v98, %v117
    %v119 = vsub.f32 %v99, %v117
    %v120 = vsub.f32 %v100, %v117
    %v121 = vsub.f32 %v101, %v117
    %v122 = vmul.f32 %v118, 1.442695
    %v123 = vpow.pop %v122
    %v124 = vmul.f32 %v119, 1.442695
    %v125 = vpow.pop %v124
    %v126 = vmul.f32 %v120, 1.442695
    %v127 = vpow.pop %v126
    %v128 = vmul.f32 %v121, 1.442695
    %v129 = vpow.pop %v128
    %v130 = vadd.f32 %v123, %v125
    %v131 = vadd.f32 %v130, %v127
    %v132 = vadd.f32 %v131, %v129
    %v133 = vlog2.pop %v132
    %v134 = vmul.f32 %v133, 0.6931472
    %v135 = vadd.f32 %v134, %v117
    %v136 = vmul.f32 %v98, %v111
    %v137 = vmul.f32 %v99, %v112
    %v138 = vmul.f32 %v100, %v113
    %v139 = vmul.f32 %v101, %v114
    %v140 = vadd.f32 %v136, %v137
    %v141 = vadd.f32 %v140, %v138
    %v142 = vadd.f32 %v141, %v139
    %v143 = vsub.f32 %v135, %v142
    %p144 = scmp.lt.s32.totalorder 0, 0
    // Predicated region
    $region62: #{tpu_custom_call.1} parent=1 // pred_check
      %p145 = pneg %p144
    $region63: #{tpu_custom_call.1} parent=1 // pred_check_branch
      %147 = sbr.rel (%p145) target = $region65
    $region64: #{tpu_custom_call.1} parent=1 // pred_region
      %v148 = vld [vmem:[#allocation2] sm:$0xff]
      %v149 = vadd.f32 %v143, 0.0
      %v150 = vadd.f32 %v148, %v149
      %151 = vst [vmem:[#allocation2] sm:$0xff] %v150
    $region65: #{tpu_custom_call.1} parent=1 // pred_fallthru
      _
    // Predicated region
    $region66: #{tpu_custom_call.1} parent=1 // pred_check
      %p152 = pneg %p93
    $region67: #{tpu_custom_call.1} parent=1 // pred_check_branch
      %154 = sbr.rel (%p152) target = $region69
    $region68: #{tpu_custom_call.1} parent=1 // pred_region
      %v155 = vlaneseq
      %v156 = vshrl.u32 %v155, 7
      %v157 = vlaneseq
      %v158 = vand.u32 %v157, 127
      %s159 = smul.u32 0, 8
      %v160 = vstv %s159
      %v161 = vadd.s32 %v160, %v156
      %v162 = vmul.u32 %v161, 128
      %v163 = vadd.s32 %v162, %v158
      %vm164 = vcmp.lt.s32.totalorder %v163, 128
      %v165 = vsel %vm164, 1, 0
      %v166 = vcvt.s32.f32 %v165
      %v167 = vld [vmem:[#allocation2] sm:$0xff]
      %v168 = vmul.f32 %v143, %v166
      %v169 = vadd.f32 %v168, 0.0
      %v170 = vadd.f32 %v167, %v169
      %171 = vst [vmem:[#allocation2] sm:$0xff] %v170
      %v172 = vld [vmem:[#allocation3] sm:$0x3]
      %v173 = vld [vmem:[%s1] sm:$0x3]
      %v174 = vsub.f32 %v172, %v173
      %v175 = vmul.f32 %v174, %v174
      %vm176 = vcmask 189440
      %v177 = vsel %vm176, %v175, 0.0
      %178 = vadd.xlane.f32.xlu0 %v177
      %v179 = vpop.xlane.xlu0 %178
      %v180 = vrot.slane %v179, 4
      %v181 = vadd.f32 %v179, %v180
      %v182 = vrot.slane %v181, 2
      %v183 = vadd.f32 %v181, %v182
      %v184 = vrot.slane %v183, 1
      %v185 = vadd.f32 %v183, %v184
      %s186 = vtos %v185
      %v187 = vld [vmem:[#allocation6] sm:$0x3]
      %v188 = vld [vmem:[#allocation8] sm:$0x3]
      %v189 = vadd.f32 %v188, 1.0
      %v190 = vmul.f32 %v187, %v187
      %v191 = vsub.f32 %v189, %v190
      %v192 = vmul.f32 %v188, 1.442695
      %v193 = vpow.pop %v192
      %v194 = vsub.f32 %v191, %v193
      %vm195 = vcmask 254976
      %v196 = vsel %vm195, %v194, 0.0
      %197 = vadd.xlane.f32.xlu0 %v196
      %v198 = vpop.xlane.xlu0 %197
      %v199 = vrot.slane %v198, 4
      %v200 = vadd.f32 %v198, %v199
      %v201 = vrot.slane %v200, 2
      %v202 = vadd.f32 %v200, %v201
      %v203 = vrot.slane %v202, 1
      %v204 = vadd.f32 %v202, %v203
      %s205 = vtos %v204
      %s206 = smul.f32 %s205, -0.5
      %v207 = vld [vmem:[%s4] sm:$0x1f]
      %v208 = vld [vmem:[#allocation9] sm:$0x1]
      %v209 = vlaneseq
      %v210 = vshrl.u32 %v209, 7
      %v211 = vsub.s32 0, %v210
      %v212 = vrot.slane %v208, %v211
      %vm213 = vcmp.eq.s32.totalorder %v156, %v212
      %v214 = vsel %vm213, 1, 0
      %v215 = vcvt.s32.f32 %v214
      %vm216 = vcmask 1044480
      %v217 = vsel %vm216, %v207, -inf
      %v218 = vrot.slane %v217, 4
      %v219 = vmax.f32 %v217, %v218
      %v220 = vrot.slane %v219, 2
      %v221 = vmax.f32 %v219, %v220
      %v222 = vrot.slane %v221, 1
      %v223 = vmax.f32 %v221, %v222
      %v224 = vsub.f32 %v207, %v223
      %v225 = vmul.f32 %v224, 1.442695
      %v226 = vpow.pop %v225
      %v227 = vsel %vm216, %v226, 0.0
      %v228 = vrot.slane %v227, 4
      %v229 = vadd.f32 %v227, %v228
      %v230 = vrot.slane %v229, 2
      %v231 = vadd.f32 %v229, %v230
      %v232 = vrot.slane %v231, 1
      %v233 = vadd.f32 %v231, %v232
      %v234 = vlog2.pop %v233
      %v235 = vmul.f32 %v234, 0.6931472
      %v236 = vadd.f32 %v235, %v223
      %v237 = vmul.f32 %v207, %v215
      %v238 = vsel %vm216, %v237, 0.0
      %v239 = vrot.slane %v238, 4
      %v240 = vadd.f32 %v238, %v239
      %v241 = vrot.slane %v240, 2
      %v242 = vadd.f32 %v240, %v241
      %v243 = vrot.slane %v242, 1
      %v244 = vadd.f32 %v242, %v243
      %vm245 = vcmp.lt.s32.totalorder %v158, 16
      %v246 = vsel %vm245, 1, 0
      %v247 = vcvt.s32.f32 %v246
      %v248 = vsub.f32 %v236, %v244
      %v249 = vmul.f32 %v248, %v247
      %vm250 = vcmask 1040384
      %v251 = vsel %vm250, %v249, 0.0
      %252 = vadd.xlane.f32.xlu0 %v251
      %v253 = vpop.xlane.xlu0 %252
      %v254 = vrot.slane %v253, 4
      %v255 = vadd.f32 %v253, %v254
      %v256 = vrot.slane %v255, 2
      %v257 = vadd.f32 %v255, %v256
      %v258 = vrot.slane %v257, 1
      %v259 = vadd.f32 %v257, %v258
      %s260 = vtos %v259
      %v261 = vld [vmem:[%s8] sm:$0x1]
      %v262 = vsub.f32 %v261, 8.0
      %v263 = vmul.f32 %v262, %v262
      %vm264 = vcmask 8192
      %v265 = vsel %vm264, %v263, 0.0
      %266 = vadd.xlane.f32.xlu0 %v265
      %v267 = vpop.xlane.xlu0 %266
      %v268 = vrot.slane %v267, 4
      %v269 = vadd.f32 %v267, %v268
      %v270 = vrot.slane %v269, 2
      %v271 = vadd.f32 %v269, %v270
      %v272 = vrot.slane %v271, 1
      %v273 = vadd.f32 %v271, %v272
      %s274 = vtos %v273
      %v275 = vld [vmem:[#allocation2] sm:$0xff]
      %276 = vadd.xlane.f32.xlu0 %v275
      %v277 = vpop.xlane.xlu0 %276
      %v278 = vrot.slane %v277, 4
      %v279 = vadd.f32 %v277, %v278
      %v280 = vrot.slane %v279, 2
      %v281 = vadd.f32 %v279, %v280
      %v282 = vrot.slane %v281, 1
      %v283 = vadd.f32 %v281, %v282
      %s284 = vtos %v283
      %s285 = smul.f32 %s260, 0.5
      %s286 = smul.f32 %s284, 0.5
      %s287 = smul.f32 %s274, 0.1
      %s288 = sadd.f32 %s186, %s206
      %s289 = sadd.f32 %s288, %s285
      %s290 = sadd.f32 %s289, %s286
      %s291 = sadd.f32 %s290, %s287
      %s292 = scalar_lea.smem [#allocation12], 0
      %293 = sst [smem:[%s292]] %s291
      %s294 = scalar_lea.smem [#allocation12], 1
      %295 = sst [smem:[%s294]] %s186
      %s296 = scalar_lea.smem [#allocation12], 2
      %297 = sst [smem:[%s296]] %s206
      %s298 = scalar_lea.smem [#allocation12], 3
      %299 = sst [smem:[%s298]] %s285
      %s300 = scalar_lea.smem [#allocation12], 4
      %301 = sst [smem:[%s300]] %s286
      %s302 = scalar_lea.smem [#allocation12], 5
      %303 = sst [smem:[%s302]] %s287
    $region69: #{tpu_custom_call.1} parent=1 // pred_fallthru
      _
    // Predicated region
    $region70: #{tpu_custom_call.1} parent=1 // pred_check
      _
    $region71: #{tpu_custom_call.1} parent=1 // pred_check_branch
      %305 = sbr.rel (0) target = $region73
    $region72: #{tpu_custom_call.1} parent=1 // pred_region
      %s307 = ssub.s32 16, 16
      %308 = vsyncadd [#allocation5], %s307
      %311 = dma.smem_to_hbm [#allocation12], 16, %s9, [#allocation5]
    $region73: #{tpu_custom_call.1} parent=1 // pred_fallthru
      _
    // Predicated region
    $region74: #{tpu_custom_call.1} parent=1 // pred_check
      _
    $region75: #{tpu_custom_call.1} parent=1 // pred_check_branch
      %313 = sbr.rel (0) target = $region77
    $region76: #{tpu_custom_call.1} parent=1 // pred_region
      %314 = dma.done [#allocation5], 16
    $region77: #{tpu_custom_call.1} parent=1 // pred_fallthru
      _
    %315 = sfence
    %316 = vsyncpa [#allocation4], 1
    %317 = vsyncpa [#allocation7], 1
    %318 = vsyncpa [#allocation10], 1
    %319 = vsyncpa [#allocation5], 1

</llo_original>
